<compile_context>
chip_gen: v7x
topology: tpu7x:2x2x1
jax: 0.10.0
libtpu: 0.0.40
codegen_flags: <defaults>
</compile_context>

<pallas_src>
import jax
import jax.numpy as jnp
from jax.experimental import pallas as pl
from jax.experimental.pallas import tpu as pltpu


def _round_up(a, m):
    return (a + m - 1) // m * m


# --------------------------------------------------------------------------- #
# Kernel
# --------------------------------------------------------------------------- #
def deepfm_kernel(ids_ref, rep_ref, cval_ref, w_ref, b_ref, sel_ref, scal_ref,
                  out_ref):
    ids = ids_ref[...].astype(jnp.float32)                       # (TB, F)

    # Expand each field's id across its V candidate lanes (tiny MXU matmul),
    # then build the one-hot by comparing against the per-lane candidate value.
    ids_exp = jnp.dot(ids, rep_ref[...],
                      preferred_element_type=jnp.float32)        # (TB, F*V)
    onehot = (jnp.abs(ids_exp - cval_ref[...]) < 0.5).astype(jnp.float32)

    # One fused MXU matmul. Columns of z:
    #   [0:H]        fc1 pre-activation
    #   [H]          linear_part  (sum_emb @ lin_w + lin_b)
    #   [H+1:H+1+E]  sum_emb (per-embedding-dim field sum)
    #   [H+1+E]      sq_all = sum_{f,e} emb^2
    #   rest         zero padding
    z = jnp.dot(onehot, w_ref[...],
                preferred_element_type=jnp.float32) + b_ref[...]  # (TB, Hpad)

    sel = sel_ref[...]                                            # (8, Hpad)
    half_fw1 = scal_ref[0]                                        # 0.5 * final_w[1]
    const = scal_ref[1]                                           # fw2*fc2_b + final_b

    # Single fused epilogue sweep + ONE cross-lane reduction:
    #   sel[0]: fw0 at the linear column, -0.5*fw1 at the sq_all column
    #   sel[1]: fw2 * fc2_w on the H fc1 columns
    #   sel[2]: 1.0 mask on the sum_emb columns
    zs = z * sel[2:3, :]
    combined = (z * sel[0:1, :]
                + jnp.maximum(z, 0.0) * sel[1:2, :]
                + half_fw1 * (zs * zs))
    out = jnp.sum(combined, axis=-1) + const                      # (TB,)
    out_ref[...] = out[None, :].astype(out_ref.dtype)             # lane-dense (1, TB)


# --------------------------------------------------------------------------- #
# One-time parameter folding (hoisted out of the per-call path)
# --------------------------------------------------------------------------- #
def prepare_deepfm_params(params):
    table = params["emb_table"].astype(jnp.float32)               # (V, E)
    V, E = table.shape
    H = params["fc1_w"].shape[1]
    F = params["fc1_w"].shape[0] // E                             # fields (== V here)
    FV = F * V
    ncols = H + 1 + E + 1
    Hpad = _round_up(ncols, 128)

    # Field-replication matrix: column f*V+v carries field f's id.
    rep = jnp.repeat(jnp.eye(F, dtype=jnp.float32), V, axis=1)    # (F, FV)
    # Candidate value per lane: column f*V+v holds v.
    cval = jnp.tile(jnp.arange(V, dtype=jnp.float32), (F,))[None, :]  # (1, FV)

    # Fused (one-hot -> heads) matrix.
    fc1_w3 = params["fc1_w"].astype(jnp.float32).reshape(F, E, H)
    w_fc1 = jnp.einsum("ve,feh->fvh", table, fc1_w3).reshape(FV, H)
    w_lin = jnp.tile(table @ params["lin_w"].astype(jnp.float32), (F, 1))   # (FV, 1)
    w_sum = jnp.tile(table, (F, 1))                                         # (FV, E)
    w_sq = jnp.tile(jnp.sum(table * table, axis=1, keepdims=True), (F, 1))  # (FV, 1)
    w_big = jnp.concatenate([w_fc1, w_lin, w_sum, w_sq], axis=1)            # (FV, ncols)
    w_big = jnp.pad(w_big, ((0, 0), (0, Hpad - ncols)))                     # (FV, Hpad)

    b_comb = jnp.concatenate(
        [params["fc1_b"].astype(jnp.float32),
         params["lin_b"].astype(jnp.float32),
         jnp.zeros((Hpad - (H + 1),), jnp.float32)])[None, :]               # (1, Hpad)

    fw = params["final_w"].astype(jnp.float32)
    sel = jnp.zeros((8, Hpad), jnp.float32)
    sel = sel.at[0, H].set(fw[0])                       # fw0 * linear_part
    sel = sel.at[0, H + 1 + E].set(-0.5 * fw[1])        # -0.5*fw1 * sq_all
    sel = sel.at[1, :H].set(fw[2] * params["fc2_w"][:, 0].astype(jnp.float32))
    sel = sel.at[2, H + 1:H + 1 + E].set(1.0)           # sum_emb mask

    scal = jnp.stack(
        [0.5 * fw[1],
         fw[2] * params["fc2_b"][0] + params["final_b"][0]]).astype(jnp.float32)

    return {"rep": rep, "cval": cval, "w_big": w_big, "b_comb": b_comb,
            "sel": sel, "scal": scal}


# --------------------------------------------------------------------------- #
# Forward wrapper
# --------------------------------------------------------------------------- #
def deepfm_pallas(x, prep):
    B, F = x.shape
    assert prep["rep"].shape[0] == F, "x.shape[1] must equal feature_dim"
    FV = prep["rep"].shape[1]
    Hpad = prep["w_big"].shape[1]

    # Batch tiling: small-B latency regime avoids heavy padding; larger batches
    # get >= 2 grid steps so both v7x TensorCores are busy, capped at TB=1024.
    if B <= 128:
        TB = _round_up(B, 8)
    else:
        B128 = _round_up(B, 128)
        TB = min(1024, max(128, _round_up(B128 // 2, 128)))
    B_pad = _round_up(B, TB)
    G = B_pad // TB

    ids = jnp.pad(x.astype(jnp.int32), ((0, B_pad - B), (0, 0)))  # pad rows use id 0

    out = pl.pallas_call(
        deepfm_kernel,
        out_shape=jax.ShapeDtypeStruct((1, B_pad), jnp.float32),
        grid=(G,),
        in_specs=[
            pl.BlockSpec((TB, F), lambda i: (i, 0)),            # ids: batch-tiled
            pl.BlockSpec((F, FV), lambda i: (0, 0)),            # replication (resident)
            pl.BlockSpec((1, FV), lambda i: (0, 0)),            # lane candidate values
            pl.BlockSpec((FV, Hpad), lambda i: (0, 0)),         # fused weights (resident)
            pl.BlockSpec((1, Hpad), lambda i: (0, 0)),          # fused bias (resident)
            pl.BlockSpec((8, Hpad), lambda i: (0, 0)),          # selector rows (resident)
            pl.BlockSpec(memory_space=pltpu.MemorySpace.SMEM),  # 2 packed scalars
        ],
        out_specs=pl.BlockSpec((1, TB), lambda i: (0, i)),      # lane-dense output row
        compiler_params=pltpu.CompilerParams(
            dimension_semantics=("parallel",)),
    )(ids, prep["rep"], prep["cval"], prep["w_big"], prep["b_comb"],
      prep["sel"], prep["scal"])

    return out[0, :B].reshape(B, 1)


# --------------------------------------------------------------------------- #
# Pure-JAX reference (matches the PyTorch forward exactly)
# --------------------------------------------------------------------------- #
def deepfm_ref(x, params):
    emb = params["emb_table"][x]                                    # (B, F, E)
    sum_emb = jnp.sum(emb, axis=1)                                  # (B, E)
    linear_part = sum_emb @ params["lin_w"] + params["lin_b"]       # (B, 1)
    interaction = 0.5 * jnp.sum(sum_emb ** 2 - jnp.sum(emb ** 2, axis=1),
                                axis=1, keepdims=True)              # (B, 1)
    dnn_in = emb.reshape(x.shape[0], -1)
    h = jnp.maximum(dnn_in @ params["fc1_w"] + params["fc1_b"], 0.0)
    dnn_out = h @ params["fc2_w"] + params["fc2_b"]                 # (B, 1)
    cat = jnp.concatenate([linear_part, interaction, dnn_out], axis=1)
    return cat @ params["final_w"].reshape(3, 1) + params["final_b"]


def init_params(key, feature_dim, embedding_dim, hidden_dim):
    ks = jax.random.split(key, 8)
    s = 0.1
    return {
        "emb_table": s * jax.random.normal(ks[0], (feature_dim, embedding_dim), jnp.float32),
        "lin_w":     s * jax.random.normal(ks[1], (embedding_dim, 1), jnp.float32),
        "lin_b":     s * jax.random.normal(ks[2], (1,), jnp.float32),
        "fc1_w":     s * jax.random.normal(ks[3], (feature_dim * embedding_dim, hidden_dim), jnp.float32),
        "fc1_b":     s * jax.random.normal(ks[4], (hidden_dim,), jnp.float32),
        "fc2_w":     s * jax.random.normal(ks[5], (hidden_dim, 1), jnp.float32),
        "fc2_b":     s * jax.random.normal(ks[6], (1,), jnp.float32),
        "final_w":   s * jax.random.normal(ks[7], (3,), jnp.float32),
        "final_b":   jnp.zeros((1,), jnp.float32),
    }


if __name__ == "__main__":
    # Small shapes consistent with the module: x is (batch, feature_dim) integer ids
    # (the model requires x.shape[1] == feature_dim for fc1 to line up).
    feature_dim, embedding_dim, hidden_dim = 16, 8, 32
    batch = 8

    key = jax.random.PRNGKey(0)
    k_param, k_x = jax.random.split(key)
    params = init_params(k_param, feature_dim, embedding_dim, hidden_dim)
    x = jax.random.randint(k_x, (batch, feature_dim), 0, feature_dim, dtype=jnp.int32)

    prep = jax.block_until_ready(prepare_deepfm_params(params))   # one-time folding
    fwd = jax.jit(deepfm_pallas)

    out = jax.block_until_ready(fwd(x, prep))
    ref = jax.block_until_ready(deepfm_ref(x, params))

    assert out.shape == (batch, 1)
    assert jnp.allclose(out, ref, rtol=2e-3, atol=2e-3), (out, ref)

    print("KERNEL_OK")
</pallas_src>

<mosaic_0001>
module attributes {stable_mosaic.version = 11 : i64} {
  func.func @deepfm_kernel(%arg0: i32, %arg1: memref<8x16xi32, #tpu.memory_space<vmem>>, %arg2: memref<16x256xf32, #tpu.memory_space<vmem>>, %arg3: memref<1x256xf32, #tpu.memory_space<vmem>>, %arg4: memref<256x128xf32, #tpu.memory_space<vmem>>, %arg5: memref<1x128xf32, #tpu.memory_space<vmem>>, %arg6: memref<8x128xf32, #tpu.memory_space<vmem>>, %arg7: memref<2xf32, #tpu.memory_space<smem>>, %arg8: memref<1x8xf32, #tpu.memory_space<vmem>>) attributes {dimension_semantics = [#tpu.dimension_semantics<parallel>], iteration_bounds = array<i64: 1>, scalar_prefetch = 0 : i64, scratch_operands = 0 : i64, tpu.core_type = #tpu.core_type<tc>, window_params = [{transform_indices = @transform_0, window_bounds = array<i64: 8, 16>}, {pipeline_mode = #tpu.pipeline_mode<synchronous>, transform_indices = @transform_1, window_bounds = array<i64: 16, 256>}, {pipeline_mode = #tpu.pipeline_mode<synchronous>, transform_indices = @transform_2, window_bounds = array<i64: 1, 256>}, {pipeline_mode = #tpu.pipeline_mode<synchronous>, transform_indices = @transform_3, window_bounds = array<i64: 256, 128>}, {pipeline_mode = #tpu.pipeline_mode<synchronous>, transform_indices = @transform_4, window_bounds = array<i64: 1, 128>}, {pipeline_mode = #tpu.pipeline_mode<synchronous>, transform_indices = @transform_5, window_bounds = array<i64: 8, 128>}, {transform_indices = @transform_6, window_bounds = array<i64: 2>}, {transform_indices = @transform_7, window_bounds = array<i64: 1, 8>}]} {
    %c0 = arith.constant 0 : index
    %c0_0 = arith.constant 0 : index
    %0 = vector.load %arg1[%c0, %c0_0] : memref<8x16xi32, #tpu.memory_space<vmem>>, vector<8x16xi32>
    %1 = arith.sitofp %0 : vector<8x16xi32> to vector<8x16xf32>
    %c0_1 = arith.constant 0 : index
    %c0_2 = arith.constant 0 : index
    %2 = vector.load %arg2[%c0_1, %c0_2] : memref<16x256xf32, #tpu.memory_space<vmem>>, vector<16x256xf32>
    %cst = arith.constant dense<0.000000e+00> : vector<8x256xf32>
    %3 = tpu.matmul %1, %2, %cst {dimension_numbers = #tpu.dot_dimension_numbers<[1], [0], [0], [1], [0, 0, 1, 1], [], []>} : vector<8x16xf32>, vector<16x256xf32>, vector<8x256xf32> -> vector<8x256xf32>
    %c0_3 = arith.constant 0 : index
    %c0_4 = arith.constant 0 : index
    %4 = vector.load %arg3[%c0_3, %c0_4] : memref<1x256xf32, #tpu.memory_space<vmem>>, vector<1x256xf32>
    %5 = vector.broadcast %4 : vector<1x256xf32> to vector<8x256xf32>
    %6 = arith.subf %3, %5 : vector<8x256xf32>
    %7 = math.absf %6 : vector<8x256xf32>
    %cst_5 = arith.constant 5.000000e-01 : f32
    %8 = vector.broadcast %cst_5 : f32 to vector<8x256xf32>
    %9 = arith.cmpf olt, %7, %8 : vector<8x256xf32>
    %10 = arith.extui %9 : vector<8x256xi1> to vector<8x256xi32>
    %11 = arith.sitofp %10 : vector<8x256xi32> to vector<8x256xf32>
    %c0_6 = arith.constant 0 : index
    %c0_7 = arith.constant 0 : index
    %12 = vector.load %arg4[%c0_6, %c0_7] : memref<256x128xf32, #tpu.memory_space<vmem>>, vector<256x128xf32>
    %cst_8 = arith.constant dense<0.000000e+00> : vector<8x128xf32>
    %13 = tpu.matmul %11, %12, %cst_8 {dimension_numbers = #tpu.dot_dimension_numbers<[1], [0], [0], [1], [0, 0, 1, 1], [], []>} : vector<8x256xf32>, vector<256x128xf32>, vector<8x128xf32> -> vector<8x128xf32>
    %c0_9 = arith.constant 0 : index
    %c0_10 = arith.constant 0 : index
    %14 = vector.load %arg5[%c0_9, %c0_10] : memref<1x128xf32, #tpu.memory_space<vmem>>, vector<1x128xf32>
    %15 = vector.broadcast %14 : vector<1x128xf32> to vector<8x128xf32>
    %16 = arith.addf %13, %15 : vector<8x128xf32>
    %c0_11 = arith.constant 0 : index
    %c0_12 = arith.constant 0 : index
    %17 = vector.load %arg6[%c0_11, %c0_12] : memref<8x128xf32, #tpu.memory_space<vmem>>, vector<8x128xf32>
    %c0_13 = arith.constant 0 : index
    %18 = memref.load %arg7[%c0_13] : memref<2xf32, #tpu.memory_space<smem>>
    %c1 = arith.constant 1 : index
    %19 = memref.load %arg7[%c1] : memref<2xf32, #tpu.memory_space<smem>>
    %20 = vector.extract_strided_slice %17 {offsets = [2, 0], sizes = [1, 128], strides = [1, 1]} : vector<8x128xf32> to vector<1x128xf32>
    %21 = vector.broadcast %20 : vector<1x128xf32> to vector<8x128xf32>
    %22 = arith.mulf %16, %21 : vector<8x128xf32>
    %23 = vector.extract_strided_slice %17 {offsets = [0, 0], sizes = [1, 128], strides = [1, 1]} : vector<8x128xf32> to vector<1x128xf32>
    %24 = vector.broadcast %23 : vector<1x128xf32> to vector<8x128xf32>
    %25 = arith.mulf %16, %24 : vector<8x128xf32>
    %cst_14 = arith.constant 0.000000e+00 : f32
    %26 = vector.broadcast %cst_14 : f32 to vector<8x128xf32>
    %27 = arith.maximumf %16, %26 : vector<8x128xf32>
    %28 = vector.extract_strided_slice %17 {offsets = [1, 0], sizes = [1, 128], strides = [1, 1]} : vector<8x128xf32> to vector<1x128xf32>
    %29 = vector.broadcast %28 : vector<1x128xf32> to vector<8x128xf32>
    %30 = arith.mulf %27, %29 : vector<8x128xf32>
    %31 = arith.addf %25, %30 : vector<8x128xf32>
    %32 = arith.mulf %22, %22 : vector<8x128xf32>
    %33 = vector.broadcast %18 : f32 to vector<8x128xf32>
    %34 = arith.mulf %33, %32 : vector<8x128xf32>
    %35 = arith.addf %31, %34 : vector<8x128xf32>
    %cst_15 = arith.constant dense<0.000000e+00> : vector<8xf32>
    %36 = vector.multi_reduction <add>, %35, %cst_15 [1] : vector<8x128xf32> to vector<8xf32>
    %37 = vector.broadcast %19 : f32 to vector<8xf32>
    %38 = arith.addf %36, %37 : vector<8xf32>
    %39 = vector.shape_cast %38 : vector<8xf32> to vector<1x8xf32>
    %c0_16 = arith.constant 0 : index
    %c0_17 = arith.constant 0 : index
    %40 = vector.load %arg8[%c0_16, %c0_17] : memref<1x8xf32, #tpu.memory_space<vmem>>, vector<1x8xf32>
    tpu.vector_store %arg8[%c0_16, %c0_17], %39 {strides = array<i32>} : memref<1x8xf32, #tpu.memory_space<vmem>>, vector<1x8xf32>,
    return
  }
  func.func @transform_0(%arg0: i32) -> (i32, i32) {
    %c0_i32 = arith.constant 0 : i32
    %c0_i32_0 = arith.constant 0 : i32
    return %arg0, %c0_i32 : i32, i32
  }
  func.func @transform_1(%arg0: i32) -> (i32, i32) {
    %c0_i32 = arith.constant 0 : i32
    %c0_i32_0 = arith.constant 0 : i32
    %c0_i32_1 = arith.constant 0 : i32
    return %c0_i32, %c0_i32_0 : i32, i32
  }
  func.func @transform_2(%arg0: i32) -> (i32, i32) {
    %c0_i32 = arith.constant 0 : i32
    %c0_i32_0 = arith.constant 0 : i32
    %c0_i32_1 = arith.constant 0 : i32
    return %c0_i32, %c0_i32_0 : i32, i32
  }
  func.func @transform_3(%arg0: i32) -> (i32, i32) {
    %c0_i32 = arith.constant 0 : i32
    %c0_i32_0 = arith.constant 0 : i32
    %c0_i32_1 = arith.constant 0 : i32
    return %c0_i32, %c0_i32_0 : i32, i32
  }
  func.func @transform_4(%arg0: i32) -> (i32, i32) {
    %c0_i32 = arith.constant 0 : i32
    %c0_i32_0 = arith.constant 0 : i32
    %c0_i32_1 = arith.constant 0 : i32
    return %c0_i32, %c0_i32_0 : i32, i32
  }
  func.func @transform_5(%arg0: i32) -> (i32, i32) {
    %c0_i32 = arith.constant 0 : i32
    %c0_i32_0 = arith.constant 0 : i32
    %c0_i32_1 = arith.constant 0 : i32
    return %c0_i32, %c0_i32_0 : i32, i32
  }
  func.func @transform_6(%arg0: i32) -> i32 {
    %c0_i32 = arith.constant 0 : i32
    %c0_i32_0 = arith.constant 0 : i32
    return %c0_i32 : i32
  }
  func.func @transform_7(%arg0: i32) -> (i32, i32) {
    %c0_i32 = arith.constant 0 : i32
    %c0_i32_0 = arith.constant 0 : i32
    return %c0_i32, %arg0 : i32, i32
  }
}

</mosaic_0001>

<llo_original>
// kernel: deepfm_pallas.1
$region0: #{deepfm_pallas.1}
  #allocation0 [shape = 'u32[]', space=smem, size = 0x4, offset = 0x4, fixed_abs, tag = 'smem constant byte address 0x4 - core index']
  #allocation1 [shape = 'u32[144,128]{1,0:T(1,128)}', space=vmem, size = 0x12000, scoped, tag = 'internal scratch']
  %s0 = inlined_call_operand.hbm [shape: s32[8,16], index: 0, kind: input, shape index: {}]
  %s1 = inlined_call_operand.hbm [shape: f32[16,256], index: 1, kind: input, shape index: {}]
  %s2 = inlined_call_operand.vmem [shape: f32[1,256], index: 2, kind: input, shape index: {}]
  %s3 = inlined_call_operand.hbm [shape: f32[256,128], index: 3, kind: input, shape index: {}]
  %s4 = inlined_call_operand.vmem [shape: f32[1,128], index: 4, kind: input, shape index: {}]
  %s5 = inlined_call_operand.vmem [shape: f32[8,128], index: 5, kind: input, shape index: {}]
  %s6 = inlined_call_operand.vmem [shape: f32[2], index: 6, kind: input, shape index: {}]
  %s7 = inlined_call_operand.hbm [shape: f32[1,8], index: 7, kind: output, shape index: {}]
  %s8 = sld [smem:[#allocation0]]
  $region54: #{deepfm_pallas.1} parent=0
    _
  %s10 = ssub.s32 1, %s8
  %s11 = scalar_select 0, %s10, %s8
  $region1: #{deepfm_pallas.1} parent=0
    #allocation2 [shape = 'u8[4096]{0}', space=vmem, size = 0x1000, scoped, tag = 'input window, operand 0, single buffered']
    #allocation3 [shape = 's32[1]{0}', space=sflag, size = 0x4, scoped, tag = 'scoped memory for deepfm_pallas.1']
    #allocation4 [shape = 's32[1]{0}', space=sflag, size = 0x4, scoped, tag = 'scoped memory for deepfm_pallas.1']
    #allocation5 [shape = 's32[1]{0}', space=sflag, size = 0x4, scoped, tag = 'scoped memory for deepfm_pallas.1']
    #allocation6 [shape = 'u8[16384]{0}', space=vmem, size = 0x4000, scoped, tag = 'input window, operand 1, single buffered']
    #allocation7 [shape = 's32[1]{0}', space=sflag, size = 0x4, scoped, tag = 'scoped memory for deepfm_pallas.1']
    #allocation8 [shape = 'u8[131072]{0}', space=vmem, size = 0x20000, scoped, tag = 'input window, operand 3, single buffered']
    #allocation9 [shape = 'u8[512]{0}', space=smem, size = 0x200, scoped, tag = 'input window, operand 6, single buffered']
    #allocation10 [shape = 'u8[512]{0}', space=vmem, size = 0x400, scoped, tag = 'output window, operand 0, single buffered']
    %12 = vsyncpa [#allocation3], 0
    %13 = vsyncpa [#allocation7], 0
    %14 = vsyncpa [#allocation5], 0
    %15 = vsyncpa [#allocation4], 0
    // Predicated region
    $region2: #{deepfm_pallas.1} parent=1 // pred_check
      _
    $region3: #{deepfm_pallas.1} parent=1 // pred_check_branch
      %17 = sbr.rel (0) target = $region5
    $region4: #{deepfm_pallas.1} parent=1 // pred_region
      %s19 = ssub.s32 128, 128
      %20 = vsyncadd [#allocation3], %s19
      %s22 = sshll.u32 [#allocation2], 4
      %s23 = int_to_ptr.vmem [resolvable:$true] %s22
      %25 = dma.hbm_to_vmem [thread:$0]  %s0, 128, %s23, [#allocation3]
    $region5: #{deepfm_pallas.1} parent=1 // pred_fallthru
      _
    // Predicated region
    $region6: #{deepfm_pallas.1} parent=1 // pred_check
      _
    $region7: #{deepfm_pallas.1} parent=1 // pred_check_branch
      %27 = sbr.rel (0) target = $region9
    $region8: #{deepfm_pallas.1} parent=1 // pred_region
      %s29 = ssub.s32 512, 512
      %30 = vsyncadd [#allocation7], %s29
      %s31 = sshll.u32 [#allocation6], 4
      %s32 = int_to_ptr.vmem [resolvable:$true] %s31
      %37 = dma.hbm_to_vmem [thread:$0]  %s1, 512, %s32, [#allocation7], 256, 256, 16
    $region9: #{deepfm_pallas.1} parent=1 // pred_fallthru
      _
    // Predicated region
    $region10: #{deepfm_pallas.1} parent=1 // pred_check
      _
    $region11: #{deepfm_pallas.1} parent=1 // pred_check_branch
      %39 = sbr.rel (0) target = $region13
    $region12: #{deepfm_pallas.1} parent=1 // pred_region
      _
    $region13: #{deepfm_pallas.1} parent=1 // pred_fallthru
      _
    // Predicated region
    $region14: #{deepfm_pallas.1} parent=1 // pred_check
      _
    $region15: #{deepfm_pallas.1} parent=1 // pred_check_branch
      %41 = sbr.rel (0) target = $region17
    $region16: #{deepfm_pallas.1} parent=1 // pred_region
      %s43 = ssub.s32 4096, 4096
      %44 = vsyncadd [#allocation7], %s43
      %s45 = sshll.u32 [#allocation8], 4
      %s46 = int_to_ptr.vmem [resolvable:$true] %s45
      %51 = dma.hbm_to_vmem [thread:$0]  %s3, 4096, %s46, [#allocation7], 128, 128, 8
    $region17: #{deepfm_pallas.1} parent=1 // pred_fallthru
      _
    // Predicated region
    $region18: #{deepfm_pallas.1} parent=1 // pred_check
      _
    $region19: #{deepfm_pallas.1} parent=1 // pred_check_branch
      %53 = sbr.rel (0) target = $region21
    $region20: #{deepfm_pallas.1} parent=1 // pred_region
      _
    $region21: #{deepfm_pallas.1} parent=1 // pred_fallthru
      _
    // Predicated region
    $region22: #{deepfm_pallas.1} parent=1 // pred_check
      _
    $region23: #{deepfm_pallas.1} parent=1 // pred_check_branch
      %55 = sbr.rel (0) target = $region25
    $region24: #{deepfm_pallas.1} parent=1 // pred_region
      _
    $region25: #{deepfm_pallas.1} parent=1 // pred_fallthru
      _
    // Predicated region
    $region26: #{deepfm_pallas.1} parent=1 // pred_check
      _
    $region27: #{deepfm_pallas.1} parent=1 // pred_check_branch
      %57 = sbr.rel (0) target = $region29
    $region28: #{deepfm_pallas.1} parent=1 // pred_region
      %s59 = ssub.s32 16, 16
      %60 = vsyncadd [#allocation5], %s59
      %s62 = sshll.u32 %s6, 4
      %s63 = int_to_ptr.vmem [resolvable:$true] %s62
      %65 = dma.vmem_to_smem %s63, 16, [#allocation9], [#allocation5]
    $region29: #{deepfm_pallas.1} parent=1 // pred_fallthru
      _
    // Predicated region
    $region30: #{deepfm_pallas.1} parent=1 // pred_check
      _
    $region31: #{deepfm_pallas.1} parent=1 // pred_check_branch
      %67 = sbr.rel (0) target = $region33
    $region32: #{deepfm_pallas.1} parent=1 // pred_region
      %68 = dma.done [#allocation3], 128
    $region33: #{deepfm_pallas.1} parent=1 // pred_fallthru
      _
    // Predicated region
    $region34: #{deepfm_pallas.1} parent=1 // pred_check
      _
    $region35: #{deepfm_pallas.1} parent=1 // pred_check_branch
      %70 = sbr.rel (0) target = $region37
    $region36: #{deepfm_pallas.1} parent=1 // pred_region
      %71 = dma.done [#allocation7], 512
    $region37: #{deepfm_pallas.1} parent=1 // pred_fallthru
      _
    // Predicated region
    $region38: #{deepfm_pallas.1} parent=1 // pred_check
      _
    $region39: #{deepfm_pallas.1} parent=1 // pred_check_branch
      %73 = sbr.rel (0) target = $region41
    $region40: #{deepfm_pallas.1} parent=1 // pred_region
      %74 = dma.done [#allocation7], 4096
    $region41: #{deepfm_pallas.1} parent=1 // pred_fallthru
      _
    // Predicated region
    $region42: #{deepfm_pallas.1} parent=1 // pred_check
      _
    $region43: #{deepfm_pallas.1} parent=1 // pred_check_branch
      %76 = sbr.rel (0) target = $region45
    $region44: #{deepfm_pallas.1} parent=1 // pred_region
      %77 = dma.done [#allocation5], 16
    $region45: #{deepfm_pallas.1} parent=1 // pred_fallthru
      _
    %78 = sfence
    %v79 = vld [vmem:[#allocation2] sm:$0xff]
    %v80 = vcvt.s32.f32 %v79
    %v81 = vld [vmem:[#allocation6] sm:$0xff]
    %v82 = vld [vmem:[#allocation6 + $0x8] sm:$0xff]
    %v83 = vld [vmem:[#allocation6 + $0x10] sm:$0xff]
    %v84 = vld [vmem:[#allocation6 + $0x18] sm:$0xff]
    %vm85 = vcmask 130048
    %v87 = vsel %vm85, %v80, 0
    %89 = vmatprep.subr.mxu0 %v82
    %90 = vmatpush1.msra.mxu0 %v81
    %91 = vmatprep.subr.mxu0 %v84
    %92 = vmatpush1.msra.mxu0 %v83
    %93 = vmatprep.subr.mxu0 0.0
    %94 = vmatpush1.msra.mxu0 0.0
    %95 = vmatprep.subr.mxu0 0.0
    %96 = vmatpush1.msra.mxu0 0.0
    %97 = vmatprep.subr.mxu0 0.0
    %98 = vmatpush1.msra.mxu0 0.0
    %99 = vmatprep.subr.mxu0 0.0
    %100 = vmatpush1.msra.mxu0 0.0
    %101 = vmatprep.subr.mxu0 0.0
    %102 = vmatpush1.msra.mxu0 0.0
    %103 = vmatprep.subr.mxu0 0.0
    %104 = vmatpush1.msra.mxu0 0.0
    %105 = vmatprep.subr.mxu0 0.0
    %106 = vmatpush1.msra.mxu0 0.0
    %107 = vmatprep.subr.mxu0 0.0
    %108 = vmatpush1.msra.mxu0 0.0
    %109 = vmatprep.subr.mxu0 0.0
    %110 = vmatpush1.msra.mxu0 0.0
    %111 = vmatprep.subr.mxu0 0.0
    %112 = vmatpush1.msra.mxu0 0.0
    %113 = vmatprep.subr.mxu0 0.0
    %114 = vmatpush1.msra.mxu0 0.0
    %115 = vmatprep.subr.mxu0 0.0
    %116 = vmatpush1.msra.mxu0 0.0
    %117 = vmatprep.subr.mxu0 0.0
    %118 = vmatpush1.msra.mxu0 0.0
    %119 = vmatprep.subr.mxu0 0.0
    %120 = vmatpush1.msra.mxu0 0.0
    %121 = vmatprep.subr.mxu0 0.0
    %122 = vmatpush1.msra.mxu0 0.0
    %123 = vmatprep.subr.mxu0 0.0
    %124 = vmatpush1.msra.mxu0 0.0
    %125 = vmatprep.subr.mxu0 0.0
    %126 = vmatpush1.msra.mxu0 0.0
    %127 = vmatprep.subr.mxu0 0.0
    %128 = vmatpush1.msra.mxu0 0.0
    %129 = vmatprep.subr.mxu0 0.0
    %130 = vmatpush1.msra.mxu0 0.0
    %131 = vmatprep.subr.mxu0 0.0
    %132 = vmatpush1.msra.mxu0 0.0
    %133 = vmatprep.subr.mxu0 0.0
    %134 = vmatpush1.msra.mxu0 0.0
    %135 = vmatprep.subr.mxu0 0.0
    %136 = vmatpush1.msra.mxu0 0.0
    %137 = vmatprep.subr.mxu0 0.0
    %138 = vmatpush1.msra.mxu0 0.0
    %139 = vmatprep.subr.mxu0 0.0
    %140 = vmatpush1.msra.mxu0 0.0
    %141 = vmatprep.subr.mxu0 0.0
    %142 = vmatpush1.msra.mxu0 0.0
    %143 = vmatprep.subr.mxu0 0.0
    %144 = vmatpush1.msra.mxu0 0.0
    %145 = vmatprep.subr.mxu0 0.0
    %146 = vmatpush1.msra.mxu0 0.0
    %147 = vmatprep.subr.mxu0 0.0
    %148 = vmatpush1.msra.mxu0 0.0
    %149 = vmatprep.subr.mxu0 0.0
    %150 = vmatpush1.msra.mxu0 0.0
    %151 = vmatprep.subr.mxu0 0.0
    %152 = vmatpush1.msra.mxu0 0.0
    %153 = vmatprep.mubr.f32.mxu0 0.0
    %154 = vmatmul.mubr.f32.gmra.mrb[0].mxu0 %v87
    %v155 = vpop.f32.mrb[0].mxu0
    %v156 = vadd.f32 0.0, %v155
    %v157 = vpop.f32.mrb[0].mxu0
    %v158 = vadd.f32 0.0, %v157
    %159 = vdwg.mxu0
    %v160 = vld [vmem:[%s2] sm:$0x3]
    %v162 = vlaneseq
    %v163 = vshrl.u32 %v162, 7
    %v164 = vsub.s32 0, %v163
    %v165 = vrot.slane %v160, %v164
    %v166 = vlaneseq
    %v167 = vshrl.u32 %v166, 7
    %v168 = vsub.s32 1, %v167
    %v169 = vrot.slane %v160, %v168
    %v172 = vsub.f32 %v156, %v165
    %v173 = vsub.f32 %v158, %v169
    %v174 = vand.u32 2147483647, %v172
    %v175 = vand.u32 2147483647, %v173
    %vm176 = vcmp.lt.f32.partialorder %v174, 0.5
    %vm177 = vcmp.lt.f32.partialorder %v175, 0.5
    %v178 = vsel %vm176, 1, 0
    %v179 = vsel %vm177, 1, 0
    %v180 = vcvt.s32.f32 %v178
    %v181 = vcvt.s32.f32 %v179
    %v182 = vld [vmem:[#allocation8] sm:$0xff]
    %v183 = vld [vmem:[#allocation8 + $0x8] sm:$0xff]
    %v184 = vld [vmem:[#allocation8 + $0x10] sm:$0xff]
    %v185 = vld [vmem:[#allocation8 + $0x18] sm:$0xff]
    %v186 = vld [vmem:[#allocation8 + $0x20] sm:$0xff]
    %v187 = vld [vmem:[#allocation8 + $0x28] sm:$0xff]
    %v188 = vld [vmem:[#allocation8 + $0x30] sm:$0xff]
    %v189 = vld [vmem:[#allocation8 + $0x38] sm:$0xff]
    %v190 = vld [vmem:[#allocation8 + $0x40] sm:$0xff]
    %v191 = vld [vmem:[#allocation8 + $0x48] sm:$0xff]
    %v192 = vld [vmem:[#allocation8 + $0x50] sm:$0xff]
    %v193 = vld [vmem:[#allocation8 + $0x58] sm:$0xff]
    %v194 = vld [vmem:[#allocation8 + $0x60] sm:$0xff]
    %v195 = vld [vmem:[#allocation8 + $0x68] sm:$0xff]
    %v196 = vld [vmem:[#allocation8 + $0x70] sm:$0xff]
    %v197 = vld [vmem:[#allocation8 + $0x78] sm:$0xff]
    %v198 = vld [vmem:[#allocation8 + $0x80] sm:$0xff]
    %v199 = vld [vmem:[#allocation8 + $0x88] sm:$0xff]
    %v200 = vld [vmem:[#allocation8 + $0x90] sm:$0xff]
    %v201 = vld [vmem:[#allocation8 + $0x98] sm:$0xff]
    %v202 = vld [vmem:[#allocation8 + $0xa0] sm:$0xff]
    %v203 = vld [vmem:[#allocation8 + $0xa8] sm:$0xff]
    %v204 = vld [vmem:[#allocation8 + $0xb0] sm:$0xff]
    %v205 = vld [vmem:[#allocation8 + $0xb8] sm:$0xff]
    %v206 = vld [vmem:[#allocation8 + $0xc0] sm:$0xff]
    %v207 = vld [vmem:[#allocation8 + $0xc8] sm:$0xff]
    %v208 = vld [vmem:[#allocation8 + $0xd0] sm:$0xff]
    %v209 = vld [vmem:[#allocation8 + $0xd8] sm:$0xff]
    %v210 = vld [vmem:[#allocation8 + $0xe0] sm:$0xff]
    %v211 = vld [vmem:[#allocation8 + $0xe8] sm:$0xff]
    %v212 = vld [vmem:[#allocation8 + $0xf0] sm:$0xff]
    %v213 = vld [vmem:[#allocation8 + $0xf8] sm:$0xff]
    %v214 = vld [vmem:[%s4] sm:$0x1]
    %v216 = vlaneseq
    %v217 = vshrl.u32 %v216, 7
    %v218 = vsub.s32 0, %v217
    %v219 = vrot.slane %v214, %v218
    %221 = vmatprep.subr.mxu0 0.0
    %222 = vmatpush1.msra.mxu0 %v182
    %223 = vmatprep.subr.mxu0 0.0
    %224 = vmatpush1.msra.mxu0 %v183
    %225 = vmatprep.subr.mxu0 0.0
    %226 = vmatpush1.msra.mxu0 %v184
    %227 = vmatprep.subr.mxu0 0.0
    %228 = vmatpush1.msra.mxu0 %v185
    %229 = vmatprep.subr.mxu0 0.0
    %230 = vmatpush1.msra.mxu0 %v186
    %231 = vmatprep.subr.mxu0 0.0
    %232 = vmatpush1.msra.mxu0 %v187
    %233 = vmatprep.subr.mxu0 0.0
    %234 = vmatpush1.msra.mxu0 %v188
    %235 = vmatprep.subr.mxu0 0.0
    %236 = vmatpush1.msra.mxu0 %v189
    %237 = vmatprep.subr.mxu0 0.0
    %238 = vmatpush1.msra.mxu0 %v190
    %239 = vmatprep.subr.mxu0 0.0
    %240 = vmatpush1.msra.mxu0 %v191
    %241 = vmatprep.subr.mxu0 0.0
    %242 = vmatpush1.msra.mxu0 %v192
    %243 = vmatprep.subr.mxu0 0.0
    %244 = vmatpush1.msra.mxu0 %v193
    %245 = vmatprep.subr.mxu0 0.0
    %246 = vmatpush1.msra.mxu0 %v194
    %247 = vmatprep.subr.mxu0 0.0
    %248 = vmatpush1.msra.mxu0 %v195
    %249 = vmatprep.subr.mxu0 0.0
    %250 = vmatpush1.msra.mxu0 %v196
    %251 = vmatprep.subr.mxu0 0.0
    %252 = vmatpush1.msra.mxu0 %v197
    %253 = vmatprep.subr.mxu0 0.0
    %254 = vmatpush1.msra.mxu0 %v198
    %255 = vmatprep.subr.mxu0 0.0
    %256 = vmatpush1.msra.mxu0 %v199
    %257 = vmatprep.subr.mxu0 0.0
    %258 = vmatpush1.msra.mxu0 %v200
    %259 = vmatprep.subr.mxu0 0.0
    %260 = vmatpush1.msra.mxu0 %v201
    %261 = vmatprep.subr.mxu0 0.0
    %262 = vmatpush1.msra.mxu0 %v202
    %263 = vmatprep.subr.mxu0 0.0
    %264 = vmatpush1.msra.mxu0 %v203
    %265 = vmatprep.subr.mxu0 0.0
    %266 = vmatpush1.msra.mxu0 %v204
    %267 = vmatprep.subr.mxu0 0.0
    %268 = vmatpush1.msra.mxu0 %v205
    %269 = vmatprep.subr.mxu0 0.0
    %270 = vmatpush1.msra.mxu0 %v206
    %271 = vmatprep.subr.mxu0 0.0
    %272 = vmatpush1.msra.mxu0 %v207
    %273 = vmatprep.subr.mxu0 0.0
    %274 = vmatpush1.msra.mxu0 %v208
    %275 = vmatprep.subr.mxu0 0.0
    %276 = vmatpush1.msra.mxu0 %v209
    %277 = vmatprep.subr.mxu0 0.0
    %278 = vmatpush1.msra.mxu0 %v210
    %279 = vmatprep.subr.mxu0 0.0
    %280 = vmatpush1.msra.mxu0 %v211
    %281 = vmatprep.subr.mxu0 0.0
    %282 = vmatpush1.msra.mxu0 %v212
    %283 = vmatprep.subr.mxu0 0.0
    %284 = vmatpush1.msra.mxu0 %v213
    %285 = vmatprep.mubr.f32.mxu0 %v181
    %286 = vmatmul.mubr.f32.gmra.mrb[0].mxu0 %v180
    %v287 = vpop.f32.mrb[0].mxu0
    %v288 = vadd.f32 %v219, %v287
    %v289 = vpop.f32.mrb[0].mxu0
    %290 = vdwg.mxu0
    %v291 = vld [vmem:[%s5] sm:$0xff]
    %s292 = sld [smem:[#allocation9]]
    %s293 = sld [smem:[#allocation9 + $0x1]]
    %v294 = vlaneseq
    %v295 = vshrl.u32 %v294, 7
    %v296 = vsub.s32 2, %v295
    %v297 = vrot.slane %v291, %v296
    %v298 = vmul.f32 %v288, %v297
    %v299 = vlaneseq
    %v300 = vshrl.u32 %v299, 7
    %v301 = vsub.s32 0, %v300
    %v302 = vrot.slane %v291, %v301
    %v303 = vmul.f32 %v288, %v302
    %v304 = vmax.f32 %v288, 0.0
    %v305 = vlaneseq
    %v306 = vshrl.u32 %v305, 7
    %v307 = vsub.s32 1, %v306
    %v308 = vrot.slane %v291, %v307
    %v309 = vmul.f32 %v304, %v308
    %v310 = vadd.f32 %v303, %v309
    %v311 = vmul.f32 %v298, %v298
    %v312 = vstv %s292
    %v313 = vmul.f32 %v312, %v311
    %v314 = vadd.f32 %v310, %v313
    %315 = vadd.xlane.f32.xlu0 %v314
    %v316 = vpop.xlane.xlu0 %315
    %v317 = vstv %s293
    %v318 = vadd.f32 %v316, %v317
    %v320 = vlaneseq
    %v321 = vand.u32 %v320, 127
    %v322 = vlaneseq
    %v323 = vshrl.u32 %v322, 7
    %v324 = vsub.s32 %v321, %v323
    %v325 = vrot.slane %v318, %v324
    %vm327 = vcmask 57344
    %328 = vst.msk [vmem:[#allocation10] sm:$0x1] %vm327, %v325
    // Predicated region
    $region46: #{deepfm_pallas.1} parent=1 // pred_check
      _
    $region47: #{deepfm_pallas.1} parent=1 // pred_check_branch
      %330 = sbr.rel (0) target = $region49
    $region48: #{deepfm_pallas.1} parent=1 // pred_region
      %s332 = ssub.s32 16, 16
      %333 = vsyncadd [#allocation4], %s332
      %s335 = sshll.u32 [#allocation10], 4
      %s336 = int_to_ptr.vmem [resolvable:$true] %s335
      %338 = dma.vmem_to_hbm [thread:$0]  %s336, 16, %s7, [#allocation4]
    $region49: #{deepfm_pallas.1} parent=1 // pred_fallthru
      _
    // Predicated region
    $region50: #{deepfm_pallas.1} parent=1 // pred_check
      _
    $region51: #{deepfm_pallas.1} parent=1 // pred_check_branch
      %340 = sbr.rel (0) target = $region53
    $region52: #{deepfm_pallas.1} parent=1 // pred_region
      %341 = dma.done [#allocation4], 16
    $region53: #{deepfm_pallas.1} parent=1 // pred_fallthru
      _
    %342 = vsyncpa [#allocation3], 1
    %343 = vsyncpa [#allocation7], 1
    %344 = vsyncpa [#allocation4], 1
    %345 = vsyncpa [#allocation5], 1

</llo_original>
